<compile_context>
chip_gen: v6e
topology: v6e:2x2x1
jax: 0.10.0
libtpu: 0.0.40
codegen_flags: <defaults>
</compile_context>

<pallas_src>
import math
from functools import partial

import jax
import jax.numpy as jnp
from jax import lax
from jax.experimental import pallas as pl
from jax.experimental.pallas import tpu as pltpu


_VMEM_LIMIT = 48 * 1024 * 1024   # headroom under v7x's 64 MiB physical VMEM; fine on v5e/v6e


def _pick_tile(dim, pref):
    """Largest legal tile: pref if it divides dim, else the full extent (keeps the
    (8,128)-or-full-dim BlockSpec rule satisfied at any shape)."""
    if dim <= pref:
        return dim
    if dim % pref == 0:
        return pref
    return dim


# ----------------------------- Pallas kernels ------------------------------

def _matmul_kernel(x_ref, w_ref, o_ref, acc_ref):
    @pl.when(pl.program_id(2) == 0)
    def _():
        acc_ref[...] = jnp.zeros_like(acc_ref)

    acc_ref[...] += jnp.dot(x_ref[...], w_ref[...],
                            preferred_element_type=jnp.float32)

    @pl.when(pl.program_id(2) == pl.num_programs(2) - 1)
    def _():
        o_ref[...] = acc_ref[...].astype(o_ref.dtype)


def pallas_matmul(x, w, out_dtype=jnp.bfloat16, tm=256, tn=256, tk=256):
    """x: [M, K] @ w: [K, N] -> [M, N]; bf16 operands, f32 accumulation, tiled."""
    M, K = x.shape
    K2, N = w.shape
    assert K == K2
    tm, tn, tk = _pick_tile(M, tm), _pick_tile(N, tn), _pick_tile(K, tk)
    cost = pl.CostEstimate(
        flops=2 * M * N * K, transcendentals=0,
        bytes_accessed=(M * K + K * N) * x.dtype.itemsize
        + M * N * jnp.dtype(out_dtype).itemsize)
    return pl.pallas_call(
        _matmul_kernel,
        out_shape=jax.ShapeDtypeStruct((M, N), out_dtype),
        grid=(M // tm, N // tn, K // tk),
        in_specs=[
            pl.BlockSpec((tm, tk), lambda i, j, k: (i, k)),
            pl.BlockSpec((tk, tn), lambda i, j, k: (k, j)),
        ],
        out_specs=pl.BlockSpec((tm, tn), lambda i, j, k: (i, j)),
        scratch_shapes=[pltpu.VMEM((tm, tn), jnp.float32)],
        compiler_params=pltpu.CompilerParams(
            dimension_semantics=("parallel", "parallel", "arbitrary"),
            vmem_limit_bytes=_VMEM_LIMIT),
        cost_estimate=cost,
    )(x, w)


def _rmsnorm_matmul_kernel(x_ref, nw_ref, w_ref, o_ref, *, eps):
    x = x_ref[...].astype(jnp.float32)
    ms = jnp.mean(x * x, axis=-1, keepdims=True)
    xn = (x * lax.rsqrt(ms + eps) * nw_ref[...]).astype(w_ref.dtype)
    o_ref[...] = jnp.dot(xn, w_ref[...],
                         preferred_element_type=jnp.float32).astype(o_ref.dtype)


def pallas_rmsnorm_matmul(x, norm_w, w, eps, out_dtype=jnp.bfloat16, tm=256, tn=256):
    """RMSNorm(x) @ w fused in one kernel. x: [M, D], w: [D, N]."""
    M, D = x.shape
    D2, N = w.shape
    assert D == D2
    tm, tn = _pick_tile(M, tm), _pick_tile(N, tn)
    nw = norm_w.reshape(1, D).astype(jnp.float32)
    return pl.pallas_call(
        partial(_rmsnorm_matmul_kernel, eps=eps),
        out_shape=jax.ShapeDtypeStruct((M, N), out_dtype),
        grid=(M // tm, N // tn),
        in_specs=[
            pl.BlockSpec((tm, D), lambda i, j: (i, 0)),
            pl.BlockSpec((1, D), lambda i, j: (0, 0)),
            pl.BlockSpec((D, tn), lambda i, j: (0, j)),
        ],
        out_specs=pl.BlockSpec((tm, tn), lambda i, j: (i, j)),
        compiler_params=pltpu.CompilerParams(
            dimension_semantics=("parallel", "parallel"),
            vmem_limit_bytes=_VMEM_LIMIT),
    )(x, nw, w)


def _rmsnorm_matmul_nt_kernel(x_ref, nw_ref, w_ref, o_ref, *, eps):
    x = x_ref[...].astype(jnp.float32)
    ms = jnp.mean(x * x, axis=-1, keepdims=True)
    xn = (x * lax.rsqrt(ms + eps) * nw_ref[...]).astype(w_ref.dtype)
    # contract on the last axis of w ([N, D]) -> no host-side transpose of emb table
    o_ref[...] = lax.dot_general(
        xn, w_ref[...], (((1,), (1,)), ((), ())),
        preferred_element_type=jnp.float32).astype(o_ref.dtype)


def pallas_rmsnorm_matmul_nt(x, norm_w, w_t, eps, out_dtype=jnp.float32,
                             tm=256, tn=256):
    """RMSNorm(x) @ w_t.T fused; w_t stored as [N, D] (tied embedding table)."""
    M, D = x.shape
    N, D2 = w_t.shape
    assert D == D2
    tm, tn = _pick_tile(M, tm), _pick_tile(N, tn)
    nw = norm_w.reshape(1, D).astype(jnp.float32)
    return pl.pallas_call(
        partial(_rmsnorm_matmul_nt_kernel, eps=eps),
        out_shape=jax.ShapeDtypeStruct((M, N), out_dtype),
        grid=(M // tm, N // tn),
        in_specs=[
            pl.BlockSpec((tm, D), lambda i, j: (i, 0)),
            pl.BlockSpec((1, D), lambda i, j: (0, 0)),
            pl.BlockSpec((tn, D), lambda i, j: (j, 0)),
        ],
        out_specs=pl.BlockSpec((tm, tn), lambda i, j: (i, j)),
        compiler_params=pltpu.CompilerParams(
            dimension_semantics=("parallel", "parallel"),
            vmem_limit_bytes=_VMEM_LIMIT),
    )(x, nw, w_t)


def _rmsnorm_kernel(x_ref, nw_ref, o_ref, *, eps):
    x = x_ref[...].astype(jnp.float32)
    ms = jnp.mean(x * x, axis=-1, keepdims=True)
    o_ref[...] = (x * lax.rsqrt(ms + eps) * nw_ref[...]).astype(o_ref.dtype)


def pallas_rmsnorm(x, norm_w, eps, out_dtype=jnp.bfloat16, tm=256):
    M, D = x.shape
    tm = _pick_tile(M, tm)
    nw = norm_w.reshape(1, D).astype(jnp.float32)
    return pl.pallas_call(
        partial(_rmsnorm_kernel, eps=eps),
        out_shape=jax.ShapeDtypeStruct((M, D), out_dtype),
        grid=(M // tm,),
        in_specs=[pl.BlockSpec((tm, D), lambda i: (i, 0)),
                  pl.BlockSpec((1, D), lambda i: (0, 0))],
        out_specs=pl.BlockSpec((tm, D), lambda i: (i, 0)),
        compiler_params=pltpu.CompilerParams(dimension_semantics=("parallel",)),
    )(x, nw)


def _attn_kernel(q_ref, k_ref, v_ref, m_ref, o_ref, *, num_heads, head_dim, scale):
    mask = m_ref[0]                                  # (1, Skv) additive mask, f32
    q_all = q_ref[0].astype(jnp.float32)             # (Sq,  H*hd)
    k_all = k_ref[0].astype(jnp.float32)             # (Skv, H*hd)
    v_all = v_ref[0].astype(jnp.float32)
    outs = []
    for h in range(num_heads):                       # static unroll over heads
        lo, hi = h * head_dim, (h + 1) * head_dim
        q = q_all[:, lo:hi]
        k = k_all[:, lo:hi]
        v = v_all[:, lo:hi]
        s = jnp.dot(q, k.T, preferred_element_type=jnp.float32) * scale + mask
        mx = jnp.max(s, axis=-1, keepdims=True)
        p = jnp.exp(s - mx)
        l = jnp.sum(p, axis=-1, keepdims=True)
        o = jnp.dot(p, v, preferred_element_type=jnp.float32)
        outs.append(o * pl.reciprocal(l, approx=True))
    # single lane-dense full-block store
    o_ref[0] = jnp.concatenate(outs, axis=-1).astype(o_ref.dtype)


def pallas_attention(q, k, v, mask_add, num_heads, head_dim):
    """q: [B, Sq, H*hd], k/v: [B, Skv, H*hd], mask_add: [B, 1, Skv] -> [B, Sq, H*hd]."""
    B, Sq, HD = q.shape
    Skv = k.shape[1]
    scale = 1.0 / math.sqrt(head_dim)
    # TODO(synk): for long contexts switch to a flash-style KV grid axis ("arbitrary")
    # with m/l/acc VMEM scratch instead of loading the whole Skv block.
    return pl.pallas_call(
        partial(_attn_kernel, num_heads=num_heads, head_dim=head_dim, scale=scale),
        out_shape=jax.ShapeDtypeStruct((B, Sq, HD), jnp.bfloat16),
        grid=(B,),
        in_specs=[
            pl.BlockSpec((1, Sq, HD), lambda b: (b, 0, 0)),
            pl.BlockSpec((1, Skv, HD), lambda b: (b, 0, 0)),
            pl.BlockSpec((1, Skv, HD), lambda b: (b, 0, 0)),
            pl.BlockSpec((1, 1, Skv), lambda b: (b, 0, 0)),
        ],
        out_specs=pl.BlockSpec((1, Sq, HD), lambda b: (b, 0, 0)),
        compiler_params=pltpu.CompilerParams(
            dimension_semantics=("parallel",),
            vmem_limit_bytes=_VMEM_LIMIT),
    )(q, k, v, mask_add.astype(jnp.float32))


def _moe_kernel(x_ref, w1_ref, w3_ref, w2_ref, comb_ref, o_ref, acc_ref):
    e = pl.program_id(1)

    @pl.when(e == 0)
    def _():
        acc_ref[...] = jnp.zeros_like(acc_ref)

    x = x_ref[...]                                           # (tm, D) bf16
    h1 = jnp.dot(x, w1_ref[0], preferred_element_type=jnp.float32)
    h3 = jnp.dot(x, w3_ref[0], preferred_element_type=jnp.float32)
    g = (h1 * jax.nn.sigmoid(h1) * h3).astype(x.dtype)       # SwiGLU, EUP sigmoid
    y = jnp.dot(g, w2_ref[0], preferred_element_type=jnp.float32)
    comb = comb_ref[...]                                     # (tm, E) f32
    sel = lax.broadcasted_iota(jnp.int32, comb.shape, 1) == e
    col = jnp.sum(jnp.where(sel, comb, 0.0), axis=-1, keepdims=True)   # (tm, 1)
    acc_ref[...] += col * y

    @pl.when(e == pl.num_programs(1) - 1)
    def _():
        o_ref[...] = acc_ref[...].astype(o_ref.dtype)


def pallas_moe(x, w1, w3, w2, combine, out_dtype=jnp.bfloat16, tm=256):
    """All experts in one pipelined kernel; expert axis is the reduction axis."""
    M, D = x.shape
    E, D2, F = w1.shape
    assert D == D2
    tm = _pick_tile(M, tm)
    return pl.pallas_call(
        _moe_kernel,
        out_shape=jax.ShapeDtypeStruct((M, D), out_dtype),
        grid=(M // tm, E),
        in_specs=[
            pl.BlockSpec((tm, D), lambda i, e: (i, 0)),
            pl.BlockSpec((1, D, F), lambda i, e: (e, 0, 0)),
            pl.BlockSpec((1, D, F), lambda i, e: (e, 0, 0)),
            pl.BlockSpec((1, F, D), lambda i, e: (e, 0, 0)),
            pl.BlockSpec((tm, E), lambda i, e: (i, 0)),
        ],
        out_specs=pl.BlockSpec((tm, D), lambda i, e: (i, 0)),
        scratch_shapes=[pltpu.VMEM((tm, D), jnp.float32)],
        compiler_params=pltpu.CompilerParams(
            dimension_semantics=("parallel", "arbitrary"),
            vmem_limit_bytes=_VMEM_LIMIT),
    )(x, w1, w3, w2, combine.astype(jnp.float32))


# ------------------------------- model glue --------------------------------

class Args:
    vocab_size = 64
    embed_dim = 32
    num_heads = 4
    head_dim = 8
    kv_latent_dim = 16
    max_seq_len = 32
    rope_theta = 10000.0
    num_layers = 2
    norm_eps = 1e-5
    num_experts = 4
    top_k = 2
    ffn_hidden = 64


def rope_cos_sin(seq_len, head_dim, theta, offset):
    inv = 1.0 / (theta ** (jnp.arange(0, head_dim, 2, dtype=jnp.float32) / head_dim))
    t = jnp.arange(offset, offset + seq_len, dtype=jnp.float32)
    freqs = jnp.outer(t, inv)                 # [S, hd/2]
    return jnp.cos(freqs), jnp.sin(freqs)


def apply_rope(x, cos, sin):
    # x: [B, S, H, hd] f32; interleaved complex-style rotation (freqs_cis convention).
    # TODO(synk): fuse into the attention kernel via pltpu.roll once shapes are scaled.
    B, S, H, hd = x.shape
    xr = x.reshape(B, S, H, hd // 2, 2)
    x1, x2 = xr[..., 0], xr[..., 1]
    c = cos[None, :, None, :]
    s = sin[None, :, None, :]
    o1 = x1 * c - x2 * s
    o2 = x1 * s + x2 * c
    return jnp.stack([o1, o2], axis=-1).reshape(B, S, H, hd)


def init_params(key, args):
    def nrm(k, shape, scale=0.02):
        return (scale * jax.random.normal(k, shape, dtype=jnp.float32)).astype(jnp.bfloat16)

    D, Hhd, L = args.embed_dim, args.num_heads * args.head_dim, args.kv_latent_dim
    E, F = args.num_experts, args.ffn_hidden
    keys = jax.random.split(key, 2 + args.num_layers)
    params = {
        "emb": nrm(keys[0], (args.vocab_size, D)),
        "norm_out": jnp.ones((D,), jnp.float32),
        "layers": [],
    }
    for li in range(args.num_layers):
        lk = jax.random.split(keys[2 + li], 10)
        params["layers"].append({
            "attn_norm": jnp.ones((D,), jnp.float32),
            "kv_norm": jnp.ones((D,), jnp.float32),
            "ffn_norm": jnp.ones((D,), jnp.float32),
            "wq": nrm(lk[0], (D, Hhd)),
            "wdkv": nrm(lk[1], (D, L)),
            # wuk || wuv fused along N so one matmul produces K and V
            "wukv": jnp.concatenate(
                [nrm(lk[2], (L, Hhd)), nrm(lk[3], (L, Hhd))], axis=1),
            "wo": nrm(lk[4], (Hhd, D)),
            "wg": nrm(lk[5], (D, E)),
            "w1": nrm(lk[6], (E, D, F)),
            "w3": nrm(lk[7], (E, D, F)),
            "w2": nrm(lk[8], (E, F, D)),
        })
    return params


def moe_ffn(lp, x2d, args):
    """Top-k MoE with SwiGLU experts; routing/top-k on host, expert compute in one kernel."""
    M, D = x2d.shape
    E, K = args.num_experts, args.top_k
    logits = pallas_matmul(x2d, lp["wg"], out_dtype=jnp.float32)   # [M, E]
    probs = jax.nn.softmax(logits, axis=-1)
    gate_vals, gate_idx = lax.top_k(probs, K)                      # [M, K]
    gate_vals = gate_vals / jnp.sum(gate_vals, axis=-1, keepdims=True)
    one_hot = jax.nn.one_hot(gate_idx, E, dtype=jnp.float32)       # [M, K, E]
    combine = jnp.sum(gate_vals[..., None] * one_hot, axis=1)      # [M, E]

    out = pallas_moe(x2d, lp["w1"], lp["w3"], lp["w2"], combine)   # [M, D] bf16

    # TODO(synk): exact aux-loss formula of MyMoe not given; using Switch/Mixtral
    # load-balancing loss  E * sum_i f_i * P_i.
    f = jnp.sum(one_hot, axis=(0, 1)) / (M * K)
    P = jnp.mean(probs, axis=0)
    aux = E * jnp.sum(f * P)
    return out, aux


def transformer_block(lp, xq, xkv, cos_q, sin_q, cos_kv, sin_kv, mask_add, args):
    B, Sq, D = xq.shape
    Skv = xkv.shape[1]
    H, hd = args.num_heads, args.head_dim
    Hhd = H * hd

    xq2d = xq.reshape(B * Sq, D)
    xkv2d = xkv.reshape(B * Skv, D)

    # fused RMSNorm + projection (bf16 operands, f32 accumulation)
    q = pallas_rmsnorm_matmul(xq2d, lp["attn_norm"], lp["wq"], args.norm_eps)      # [B*Sq, Hhd]
    latent = pallas_rmsnorm_matmul(xkv2d, lp["kv_norm"], lp["wdkv"], args.norm_eps)  # [B*Skv, L]
    kv = pallas_matmul(latent, lp["wukv"])                                         # [B*Skv, 2*Hhd]
    k = kv[:, :Hhd]
    v = kv[:, Hhd:]

    # RoPE (plain-JAX glue, f32 math); no head transposes needed downstream.
    qr = apply_rope(q.reshape(B, Sq, H, hd).astype(jnp.float32), cos_q, sin_q)
    kr = apply_rope(k.reshape(B, Skv, H, hd).astype(jnp.float32), cos_kv, sin_kv)

    qf = qr.reshape(B, Sq, Hhd).astype(jnp.bfloat16)
    kf = kr.reshape(B, Skv, Hhd).astype(jnp.bfloat16)
    vf = v.reshape(B, Skv, Hhd)

    attn = pallas_attention(qf, kf, vf, mask_add[:, None, :], H, hd)   # [B, Sq, Hhd]
    attn_out = pallas_matmul(attn.reshape(B * Sq, Hhd), lp["wo"])      # [B*Sq, D]

    h = xq + attn_out.reshape(B, Sq, D)
    ffn_in = pallas_rmsnorm(h.reshape(B * Sq, D), lp["ffn_norm"], args.norm_eps)
    moe_out, aux = moe_ffn(lp, ffn_in, args)
    out = h + moe_out.reshape(B, Sq, D)
    latent_cache = latent.reshape(B, Skv, args.kv_latent_dim)
    return out, latent_cache, aux


def llm_forward(params, input_ids, kv_context_ids, kv_context_mask, start_pos, args):
    B, q_len = input_ids.shape
    kv_len = kv_context_ids.shape[1]
    D = args.embed_dim

    query_emb = jnp.take(params["emb"], input_ids, axis=0)        # [B, Sq, D] bf16
    kv_emb = jnp.take(params["emb"], kv_context_ids, axis=0)      # [B, Skv, D] bf16

    cos_q, sin_q = rope_cos_sin(q_len, args.head_dim, args.rope_theta, start_pos)
    cos_kv, sin_kv = rope_cos_sin(kv_len, args.head_dim, args.rope_theta, 0)

    mask_add = jnp.where(kv_context_mask > 0, 0.0, -1e9).astype(jnp.float32)  # [B, Skv]

    x = query_emb
    total_aux = jnp.asarray(0.0, jnp.float32)
    for lp in params["layers"]:
        x, _latent, aux = transformer_block(
            lp, x, kv_emb, cos_q, sin_q, cos_kv, sin_kv, mask_add, args)
        total_aux = total_aux + aux

    # final RMSNorm + tied lm_head, contracting against emb stored as [V, D] (no .T copy)
    logits = pallas_rmsnorm_matmul_nt(
        x.reshape(B * q_len, D), params["norm_out"], params["emb"],
        args.norm_eps, out_dtype=jnp.float32).reshape(B, q_len, args.vocab_size)
    return logits, None, total_aux


# --------------------------------- driver ----------------------------------

if __name__ == "__main__":
    args = Args()
    key = jax.random.PRNGKey(0)
    pkey, ikey, ckey = jax.random.split(key, 3)

    params = init_params(pkey, args)

    B, q_len, kv_len = 2, 8, 8
    input_ids = jax.random.randint(ikey, (B, q_len), 0, args.vocab_size)
    kv_context_ids = jax.random.randint(ckey, (B, kv_len), 0, args.vocab_size)
    kv_context_mask = jnp.ones((B, kv_len), jnp.float32)

    logits, _cache, aux = llm_forward(
        params, input_ids, kv_context_ids, kv_context_mask, 0, args)

    jax.block_until_ready(logits)
    jax.block_until_ready(aux)
    assert logits.shape == (B, q_len, args.vocab_size)
    print("KERNEL_OK")
</pallas_src>

<mosaic_0001>
module attributes {stable_mosaic.version = 11 : i64} {
  func.func @_rmsnorm_matmul_kernel(%arg0: i32, %arg1: i32, %arg2: memref<16x32xbf16, #tpu.memory_space<vmem>>, %arg3: memref<1x32xf32, #tpu.memory_space<vmem>>, %arg4: memref<32x32xbf16, #tpu.memory_space<vmem>>, %arg5: memref<16x32xbf16, #tpu.memory_space<vmem>>) attributes {dimension_semantics = [#tpu.dimension_semantics<parallel>, #tpu.dimension_semantics<parallel>], iteration_bounds = array<i64: 1, 1>, scalar_prefetch = 0 : i64, scratch_operands = 0 : i64, tpu.core_type = #tpu.core_type<tc>, window_params = [{transform_indices = @transform_0, window_bounds = array<i64: 16, 32>}, {pipeline_mode = #tpu.pipeline_mode<synchronous>, transform_indices = @transform_1, window_bounds = array<i64: 1, 32>}, {transform_indices = @transform_2, window_bounds = array<i64: 32, 32>}, {transform_indices = @transform_3, window_bounds = array<i64: 16, 32>}]} {
    %c0 = arith.constant 0 : index
    %c0_0 = arith.constant 0 : index
    %0 = vector.load %arg2[%c0, %c0_0] : memref<16x32xbf16, #tpu.memory_space<vmem>>, vector<16x32xbf16>
    %1 = arith.extf %0 : vector<16x32xbf16> to vector<16x32xf32>
    %2 = arith.mulf %1, %1 : vector<16x32xf32>
    %cst = arith.constant dense<0.000000e+00> : vector<16xf32>
    %3 = vector.multi_reduction <add>, %2, %cst [1] : vector<16x32xf32> to vector<16xf32>
    %4 = vector.shape_cast %3 : vector<16xf32> to vector<16x1xf32>
    %cst_1 = arith.constant 3.200000e+01 : f32
    %5 = vector.broadcast %cst_1 : f32 to vector<16x1xf32>
    %6 = arith.divf %4, %5 : vector<16x1xf32>
    %cst_2 = arith.constant 9.99999974E-6 : f32
    %7 = vector.broadcast %cst_2 : f32 to vector<16x1xf32>
    %8 = arith.addf %6, %7 : vector<16x1xf32>
    %9 = math.rsqrt %8 : vector<16x1xf32>
    %10 = vector.broadcast %9 : vector<16x1xf32> to vector<16x32xf32>
    %11 = arith.mulf %1, %10 : vector<16x32xf32>
    %c0_3 = arith.constant 0 : index
    %c0_4 = arith.constant 0 : index
    %12 = vector.load %arg3[%c0_3, %c0_4] : memref<1x32xf32, #tpu.memory_space<vmem>>, vector<1x32xf32>
    %13 = vector.broadcast %12 : vector<1x32xf32> to vector<16x32xf32>
    %14 = arith.mulf %11, %13 : vector<16x32xf32>
    %15 = arith.truncf %14 : vector<16x32xf32> to vector<16x32xbf16>
    %c0_5 = arith.constant 0 : index
    %c0_6 = arith.constant 0 : index
    %16 = vector.load %arg4[%c0_5, %c0_6] : memref<32x32xbf16, #tpu.memory_space<vmem>>, vector<32x32xbf16>
    %cst_7 = arith.constant dense<0.000000e+00> : vector<16x32xf32>
    %17 = tpu.matmul %15, %16, %cst_7 {dimension_numbers = #tpu.dot_dimension_numbers<[1], [0], [0], [1], [0, 0, 1, 1], [], []>} : vector<16x32xbf16>, vector<32x32xbf16>, vector<16x32xf32> -> vector<16x32xf32>
    %18 = arith.truncf %17 : vector<16x32xf32> to vector<16x32xbf16>
    %c0_8 = arith.constant 0 : index
    %c0_9 = arith.constant 0 : index
    %19 = vector.load %arg5[%c0_8, %c0_9] : memref<16x32xbf16, #tpu.memory_space<vmem>>, vector<16x32xbf16>
    tpu.vector_store %arg5[%c0_8, %c0_9], %18 {strides = array<i32>} : memref<16x32xbf16, #tpu.memory_space<vmem>>, vector<16x32xbf16>,
    return
  }
  func.func @transform_0(%arg0: i32, %arg1: i32) -> (i32, i32) {
    %c0_i32 = arith.constant 0 : i32
    %c0_i32_0 = arith.constant 0 : i32
    return %arg0, %c0_i32 : i32, i32
  }
  func.func @transform_1(%arg0: i32, %arg1: i32) -> (i32, i32) {
    %c0_i32 = arith.constant 0 : i32
    %c0_i32_0 = arith.constant 0 : i32
    %c0_i32_1 = arith.constant 0 : i32
    return %c0_i32, %c0_i32_0 : i32, i32
  }
  func.func @transform_2(%arg0: i32, %arg1: i32) -> (i32, i32) {
    %c0_i32 = arith.constant 0 : i32
    %c0_i32_0 = arith.constant 0 : i32
    return %c0_i32, %arg1 : i32, i32
  }
  func.func @transform_3(%arg0: i32, %arg1: i32) -> (i32, i32) {
    %c0_i32 = arith.constant 0 : i32
    return %arg0, %arg1 : i32, i32
  }
}

</mosaic_0001>

<llo_original>
// kernel: tpu_custom_call.1
$region0: #{tpu_custom_call.1}
  #allocation0 [shape = 'u32[]', space=smem, size = 0x4, offset = 0x4, fixed_abs, tag = 'smem constant byte address 0x4 - core index']
  #allocation1 [shape = 'u32[144,128]{1,0:T(1,128)}', space=vmem, size = 0x12000, scoped, tag = 'internal scratch']
  %s0 = inlined_call_operand.hbm [shape: bf16[16,32], index: 0, kind: input, shape index: {}]
  %s1 = inlined_call_operand.vmem [shape: f32[1,32], index: 1, kind: input, shape index: {}]
  %s2 = inlined_call_operand.hbm [shape: bf16[32,32], index: 2, kind: input, shape index: {}]
  %s3 = inlined_call_operand.hbm [shape: bf16[16,32], index: 3, kind: output, shape index: {}]
  %s4 = sld [smem:[#allocation0]]
  $region30: #{tpu_custom_call.1} parent=0
    _
  %s6 = ssub.s32 1, %s4
  %s7 = scalar_select 0, %s6, %s4
  $region1: #{tpu_custom_call.1} parent=0
    #allocation2 [shape = 'u8[4096]{0}', space=vmem, size = 0x1000, scoped, tag = 'input window, operand 0, single buffered']
    #allocation3 [shape = 's32[1]{0}', space=sflag, size = 0x4, scoped, tag = 'scoped memory for tpu_custom_call.1']
    #allocation4 [shape = 's32[1]{0}', space=sflag, size = 0x4, scoped, tag = 'scoped memory for tpu_custom_call.1']
    #allocation5 [shape = 'u8[8192]{0}', space=vmem, size = 0x2000, scoped, tag = 'input window, operand 2, single buffered']
    #allocation6 [shape = 's32[1]{0}', space=sflag, size = 0x4, scoped, tag = 'scoped memory for tpu_custom_call.1']
    #allocation7 [shape = 'u8[4096]{0}', space=vmem, size = 0x1000, scoped, tag = 'output window, operand 0, single buffered']
    %8 = vsyncpa [#allocation3], 0
    %9 = vsyncpa [#allocation6], 0
    %10 = vsyncpa [#allocation4], 0
    // Predicated region
    $region2: #{tpu_custom_call.1} parent=1 // pred_check
      _
    $region3: #{tpu_custom_call.1} parent=1 // pred_check_branch
      %12 = sbr.rel (0) target = $region5
    $region4: #{tpu_custom_call.1} parent=1 // pred_region
      %s14 = ssub.s32 128, 128
      %15 = vsyncadd [#allocation3], %s14
      %s16 = sshll.u32 [#allocation2], 4
      %s17 = int_to_ptr.vmem [resolvable:$true] %s16
      %22 = dma.hbm_to_vmem [thread:$0]  %s0, 128, %s17, [#allocation3], 64, 64, 4
    $region5: #{tpu_custom_call.1} parent=1 // pred_fallthru
      _
    // Predicated region
    $region6: #{tpu_custom_call.1} parent=1 // pred_check
      _
    $region7: #{tpu_custom_call.1} parent=1 // pred_check_branch
      %24 = sbr.rel (0) target = $region9
    $region8: #{tpu_custom_call.1} parent=1 // pred_region
      _
    $region9: #{tpu_custom_call.1} parent=1 // pred_fallthru
      _
    // Predicated region
    $region10: #{tpu_custom_call.1} parent=1 // pred_check
      _
    $region11: #{tpu_custom_call.1} parent=1 // pred_check_branch
      %26 = sbr.rel (0) target = $region13
    $region12: #{tpu_custom_call.1} parent=1 // pred_region
      %s28 = ssub.s32 256, 256
      %29 = vsyncadd [#allocation6], %s28
      %s30 = sshll.u32 [#allocation5], 4
      %s31 = int_to_ptr.vmem [resolvable:$true] %s30
      %36 = dma.hbm_to_vmem [thread:$0]  %s2, 256, %s31, [#allocation6], 64, 64, 4
    $region13: #{tpu_custom_call.1} parent=1 // pred_fallthru
      _
    // Predicated region
    $region14: #{tpu_custom_call.1} parent=1 // pred_check
      _
    $region15: #{tpu_custom_call.1} parent=1 // pred_check_branch
      %38 = sbr.rel (0) target = $region17
    $region16: #{tpu_custom_call.1} parent=1 // pred_region
      %39 = dma.done [#allocation3], 128
    $region17: #{tpu_custom_call.1} parent=1 // pred_fallthru
      _
    // Predicated region
    $region18: #{tpu_custom_call.1} parent=1 // pred_check
      _
    $region19: #{tpu_custom_call.1} parent=1 // pred_check_branch
      %41 = sbr.rel (0) target = $region21
    $region20: #{tpu_custom_call.1} parent=1 // pred_region
      %42 = dma.done [#allocation6], 256
    $region21: #{tpu_custom_call.1} parent=1 // pred_fallthru
      _
    %v44 = vld [vmem:[#allocation2] sm:$0xf]
    %v45 = vld [vmem:[#allocation2 + $0x4] sm:$0xf]
    %v46 = vunpack.c.l.bf16 %v44
    %v47 = vunpack.c.l.bf16 %v45
    %v48 = vmul.f32 %v46, %v46
    %v49 = vmul.f32 %v47, %v47
    %vm50 = vcmask 261120
    %v51 = vsel %vm50, %v48, 0.0
    %52 = vadd.xlane.f32.xlu0 %v51
    %v53 = vpop.xlane.xlu0 %52
    %v54 = vsel %vm50, %v49, 0.0
    %55 = vadd.xlane.f32.xlu0 %v54
    %v56 = vpop.xlane.xlu0 %55
    %v57 = vrcp.pop 32.0
    %v58 = vmul.f32 %v53, %v57
    %v59 = vmul.f32 %v56, %v57
    %v60 = vadd.f32 %v58, 1e-05
    %v61 = vadd.f32 %v59, 1e-05
    %v62 = vrsqrt.pop %v60
    %v63 = vrsqrt.pop %v61
    %v64 = vmul.f32 %v46, %v62
    %v65 = vmul.f32 %v47, %v63
    %v66 = vld [vmem:[%s1] sm:$0x1]
    %v68 = vlaneseq
    %v69 = vshrl.u32 %v68, 7
    %v70 = vsub.s32 0, %v69
    %v71 = vrot.slane %v66, %v70
    %v73 = vmul.f32 %v64, %v71
    %v74 = vmul.f32 %v65, %v71
    %v75 = vpack.c.bf16 %v74, %v73
    %v76 = vld [vmem:[#allocation5] sm:$0xf]
    %v77 = vld [vmem:[#allocation5 + $0x4] sm:$0xf]
    %v78 = vld [vmem:[#allocation5 + $0x8] sm:$0xf]
    %v79 = vld [vmem:[#allocation5 + $0xc] sm:$0xf]
    %v84 = vunpack.c.l.b16 %v76
    %v85 = vunpack.c.l.b16 %v77
    %v86 = vunpack.c.l.b16 %v78
    %v87 = vunpack.c.l.b16 %v79
    %v88 = vpack.c.b16 %v85, %v84
    %v89 = vpack.c.b16 %v87, %v86
    %v93 = vsel %vm50, %v75, 0
    %95 = vmatprep.subr.bf16.mxu0 0
    %96 = vmatpush1.bf16.msra.mxu0 0
    %97 = vmatprep.subr.bf16.mxu0 0
    %98 = vmatpush1.bf16.msra.mxu0 0
    %99 = vmatprep.subr.bf16.mxu0 0
    %100 = vmatpush1.bf16.msra.mxu0 0
    %101 = vmatprep.subr.bf16.mxu0 0
    %102 = vmatpush1.bf16.msra.mxu0 0
    %103 = vmatprep.subr.bf16.mxu0 0
    %104 = vmatpush1.bf16.msra.mxu0 0
    %105 = vmatprep.subr.bf16.mxu0 0
    %106 = vmatpush1.bf16.msra.mxu0 0
    %107 = vmatprep.subr.bf16.mxu0 0
    %108 = vmatpush1.bf16.msra.mxu0 %v89
    %109 = vmatprep.subr.bf16.mxu0 0
    %110 = vmatpush1.bf16.msra.mxu0 %v88
    %111 = vmatprep.subr.bf16.mxu0 0
    %112 = vmatpush2.bf16.msra.mxu0 0
    %113 = vmatprep.subr.bf16.mxu0 0
    %114 = vmatpush2.bf16.msra.mxu0 0
    %115 = vmatprep.subr.bf16.mxu0 0
    %116 = vmatpush2.bf16.msra.mxu0 0
    %117 = vmatprep.subr.bf16.mxu0 0
    %118 = vmatpush2.bf16.msra.mxu0 0
    %119 = vmatprep.subr.bf16.mxu0 0
    %120 = vmatpush2.bf16.msra.mxu0 0
    %121 = vmatprep.subr.bf16.mxu0 0
    %122 = vmatpush2.bf16.msra.mxu0 0
    %123 = vmatprep.subr.bf16.mxu0 0
    %124 = vmatpush2.bf16.msra.mxu0 0
    %125 = vmatprep.subr.bf16.mxu0 0
    %126 = vmatpush2.bf16.msra.mxu0 0
    %127 = vmatprep.mubr.bf16.mxu0 0
    %128 = vmatmul.mubr.bf16.gmra.mxu0 %v93
    %v129 = vpop.f32.mrf.mxu0
    %v130 = vadd.f32 0.0, %v129
    %v131 = vpop.f32.mrf.mxu0
    %v132 = vpop.f32.mrf.mxu0
    %v133 = vadd.f32 0.0, %v132
    %v134 = vpop.f32.mrf.mxu0
    %135 = vdwg.mxu0
    %v136 = vpack.c.bf16 %v133, %v130
    %v138 = vunpack.c.l.b16 %v136
    %v139 = vunpack.c.h.b16 %v136
    %v140 = vpack.c.b16 %v138, %v138
    %v141 = vpack.c.b16 %v139, %v139
    %vm144 = vcmask 257024
    %145 = vst.msk [vmem:[#allocation7] sm:$0xf] %vm144, %v140
    %146 = vst.msk [vmem:[#allocation7 + $0x4] sm:$0xf] %vm144, %v141
    // Predicated region
    $region22: #{tpu_custom_call.1} parent=1 // pred_check
      _
    $region23: #{tpu_custom_call.1} parent=1 // pred_check_branch
      %148 = sbr.rel (0) target = $region25
    $region24: #{tpu_custom_call.1} parent=1 // pred_region
      %s150 = ssub.s32 128, 128
      %151 = vsyncadd [#allocation4], %s150
      %s152 = sshll.u32 [#allocation7], 4
      %s153 = int_to_ptr.vmem [resolvable:$true] %s152
      %158 = dma.vmem_to_hbm [thread:$0]  %s153, 128, %s3, [#allocation4], 64, 64, 4
    $region25: #{tpu_custom_call.1} parent=1 // pred_fallthru
      _
    // Predicated region
    $region26: #{tpu_custom_call.1} parent=1 // pred_check
      _
    $region27: #{tpu_custom_call.1} parent=1 // pred_check_branch
      %160 = sbr.rel (0) target = $region29
    $region28: #{tpu_custom_call.1} parent=1 // pred_region
      %161 = dma.done [#allocation4], 128
    $region29: #{tpu_custom_call.1} parent=1 // pred_fallthru
      _
    %162 = vsyncpa [#allocation3], 1
    %163 = vsyncpa [#allocation6], 1
    %164 = vsyncpa [#allocation4], 1

</llo_original>
